<compile_context>
chip_gen: v6e
topology: v6e:2x2x1
jax: 0.10.0
libtpu: 0.0.40
codegen_flags: <defaults>
</compile_context>

<pallas_src>
import jax
import jax.numpy as jnp
from jax import lax
from jax.experimental import pallas as pl
from jax.experimental.pallas import tpu as pltpu

BN_EPS = 1e-5
VMEM_LIMIT_BYTES = 32 * 1024 * 1024  # comfortable on v5e (16 MiB default) .. v7x (64 MiB phys)


def _round_up(x, m):
    return ((x + m - 1) // m) * m


def _fr_stats_kernel(x_ref, w_ref, sum_ref, sumsq_ref):
    # x_ref:   (C_in, TM) activation tile (channels-major)
    # w_ref:   (C_out, C_in) combined conv_1/conv_2 1x1 weights (VMEM-resident)
    # sum_ref, sumsq_ref: (C_out, 1) f32 accumulators, grid-resident outputs
    i = pl.program_id(0)

    @pl.when(i == 0)
    def _():
        sum_ref[...] = jnp.zeros_like(sum_ref)
        sumsq_ref[...] = jnp.zeros_like(sumsq_ref)

    x = jnp.maximum(x_ref[...], 0.0)                                   # ReLU
    y = jnp.dot(w_ref[...], x, preferred_element_type=jnp.float32)     # (C_out, TM)
    sum_ref[...] += jnp.sum(y, axis=1, keepdims=True)
    sumsq_ref[...] += jnp.sum(y * y, axis=1, keepdims=True)


def _fr_norm_kernel(x_ref, w_ref, scale_ref, shift_ref, o_ref):
    # x_ref: (C_in, TM); w_ref: (C_out, C_in); scale/shift: (C_out, 1)
    # o_ref: (C_out, TM) lane-dense output tile
    x = jnp.maximum(x_ref[...], 0.0)                                   # ReLU
    y = jnp.dot(w_ref[...], x, preferred_element_type=jnp.float32)     # (C_out, TM)
    o_ref[...] = y * scale_ref[...] + shift_ref[...]                   # folded BatchNorm


def factorized_reduce(x_nchw, w1, w2, gamma, beta, *, tm=1024):
    """x_nchw: (N, C_in, H, W) f32. w1/w2: (C_out//2, C_in, 1, 1). gamma/beta: (C_out,)."""
    N, C_in, H, W = x_nchw.shape
    # 1x1 conv, stride 2, padding 0 -> output picks elements at ::2 spatially.
    Ho = (H - 1) // 2 + 1
    Wo = (W - 1) // 2 + 1
    M = N * Ho * Wo

    # Glue (XLA): stride-2 subsample + swap (N, C) so channels lead and the
    # flattened pixel axis M sits on lanes inside the kernel.
    # TODO(synk): fuse this ::2 gather / axis swap into the kernel DMA (strided
    # index_map on the raw NCHW input) to avoid the extra HBM round trip.
    x_sub = x_nchw[:, :, ::2, ::2]                                     # (N, C_in, Ho, Wo)
    x_cm = jnp.transpose(x_sub, (1, 0, 2, 3)).reshape(C_in, M)         # (C_in, M)
    x_cm = x_cm.astype(jnp.float32)

    # Combined 1x1 weights: concat along output channels -> (C_out, C_in).
    w_mat = jnp.concatenate([w1[:, :, 0, 0], w2[:, :, 0, 0]], axis=0).astype(jnp.float32)
    C_out = w_mat.shape[0]

    # Pad the pixel axis (lanes) to a multiple of the tile. Zero columns
    # contribute nothing to sum/sumsq (relu(0)=0) and we divide by the true M.
    tm = min(tm, _round_up(M, 128))
    M_pad = _round_up(M, tm)
    if M_pad != M:
        x_cm = jnp.pad(x_cm, ((0, 0), (0, M_pad - M)))
    n_tiles = M_pad // tm

    # ---------------- pass 1: global BN statistics (streaming reduction) ----
    sum_, sumsq = pl.pallas_call(
        _fr_stats_kernel,
        out_shape=(jax.ShapeDtypeStruct((C_out, 1), jnp.float32),
                   jax.ShapeDtypeStruct((C_out, 1), jnp.float32)),
        grid_spec=pltpu.PrefetchScalarGridSpec(
            num_scalar_prefetch=0,
            grid=(n_tiles,),
            in_specs=[pl.BlockSpec((C_in, tm), lambda i: (0, i)),
                      pl.BlockSpec((C_out, C_in), lambda i: (0, 0))],
            out_specs=[pl.BlockSpec((C_out, 1), lambda i: (0, 0)),
                       pl.BlockSpec((C_out, 1), lambda i: (0, 0))],
        ),
        compiler_params=pltpu.CompilerParams(
            dimension_semantics=("arbitrary",),
            vmem_limit_bytes=VMEM_LIMIT_BYTES),
    )(x_cm, w_mat)

    # Fold BatchNorm (training-mode batch stats, biased variance, eps=1e-5,
    # affine) into a single per-channel scale/shift. Tiny (C_out,1) XLA ops.
    inv_m = jnp.float32(1.0 / M)
    mean = sum_ * inv_m
    var = jnp.maximum(sumsq * inv_m - mean * mean, 0.0)
    g = gamma.reshape(C_out, 1).astype(jnp.float32)
    b = beta.reshape(C_out, 1).astype(jnp.float32)
    scale = g * lax.rsqrt(var + BN_EPS)
    shift = b - mean * scale

    # ---------------- pass 2: recompute + normalize (streaming, parallel) ---
    out_cm = pl.pallas_call(
        _fr_norm_kernel,
        out_shape=jax.ShapeDtypeStruct((C_out, M_pad), jnp.float32),
        grid_spec=pltpu.PrefetchScalarGridSpec(
            num_scalar_prefetch=0,
            grid=(n_tiles,),
            in_specs=[pl.BlockSpec((C_in, tm), lambda i: (0, i)),
                      pl.BlockSpec((C_out, C_in), lambda i: (0, 0)),
                      pl.BlockSpec((C_out, 1), lambda i: (0, 0)),
                      pl.BlockSpec((C_out, 1), lambda i: (0, 0))],
            out_specs=pl.BlockSpec((C_out, tm), lambda i: (0, i)),
        ),
        compiler_params=pltpu.CompilerParams(
            dimension_semantics=("parallel",),          # v7x: split rows across TCs
            vmem_limit_bytes=VMEM_LIMIT_BYTES),
    )(x_cm, w_mat, scale, shift)

    # Back to NCHW: (C_out, M) -> (C_out, N, Ho, Wo) -> (N, C_out, Ho, Wo).
    out = out_cm[:, :M].reshape(C_out, N, Ho, Wo)
    return jnp.transpose(out, (1, 0, 2, 3))


def _reference(x_nchw, w1, w2, gamma, beta):
    """Pure-JAX reference mirroring the PyTorch forward (IMG=False, training BN)."""
    x = jnp.maximum(x_nchw, 0.0)
    xs = x[:, :, ::2, ::2]
    c1 = jnp.einsum("nchw,oc->nohw", xs, w1[:, :, 0, 0])
    c2 = jnp.einsum("nchw,oc->nohw", xs, w2[:, :, 0, 0])
    out = jnp.concatenate([c1, c2], axis=1)
    mean = jnp.mean(out, axis=(0, 2, 3), keepdims=True)
    var = jnp.mean((out - mean) ** 2, axis=(0, 2, 3), keepdims=True)
    out = (out - mean) / jnp.sqrt(var + BN_EPS)
    return out * gamma.reshape(1, -1, 1, 1) + beta.reshape(1, -1, 1, 1)


if __name__ == "__main__":
    key = jax.random.PRNGKey(0)
    # Small shapes for the correctness check. For benchmarking/tuning, use
    # realistic NAS shapes (e.g. N>=16, C>=128, H=W>=32) instead.
    N, C_in, H, W = 2, 4, 16, 16
    C_out = 4
    assert C_out % 2 == 0

    k_x, k_w1, k_w2 = jax.random.split(key, 3)
    x = jax.random.normal(k_x, (N, C_in, H, W), dtype=jnp.float32)
    # nn.Conv2d(C_in, C_out//2, 1, stride=2, bias=False) weights.
    w1 = jax.random.normal(k_w1, (C_out // 2, C_in, 1, 1), dtype=jnp.float32) * 0.1
    w2 = jax.random.normal(k_w2, (C_out // 2, C_in, 1, 1), dtype=jnp.float32) * 0.1
    # BatchNorm2d(affine=True) default init: weight = 1, bias = 0.
    gamma = jnp.ones((C_out,), dtype=jnp.float32)
    beta = jnp.zeros((C_out,), dtype=jnp.float32)

    out = factorized_reduce(x, w1, w2, gamma, beta)
    jax.block_until_ready(out)

    ref = _reference(x, w1, w2, gamma, beta)
    assert out.shape == (N, C_out, H // 2, W // 2), out.shape
    assert jnp.allclose(out, ref, atol=1e-4, rtol=1e-4), "mismatch vs reference"

    print("KERNEL_OK")
</pallas_src>

<mosaic_0001>
module attributes {stable_mosaic.version = 11 : i64} {
  func.func @_fr_stats_kernel(%arg0: i32, %arg1: memref<4x128xf32, #tpu.memory_space<vmem>>, %arg2: memref<4x4xf32, #tpu.memory_space<vmem>>, %arg3: memref<4x1xf32, #tpu.memory_space<vmem>>, %arg4: memref<4x1xf32, #tpu.memory_space<vmem>>) attributes {dimension_semantics = [#tpu.dimension_semantics<arbitrary>], iteration_bounds = array<i64: 1>, scalar_prefetch = 0 : i64, scratch_operands = 0 : i64, tpu.core_type = #tpu.core_type<tc>, window_params = [{transform_indices = @transform_0, window_bounds = array<i64: 4, 128>}, {pipeline_mode = #tpu.pipeline_mode<synchronous>, transform_indices = @transform_1, window_bounds = array<i64: 4, 4>}, {pipeline_mode = #tpu.pipeline_mode<synchronous>, transform_indices = @transform_2, window_bounds = array<i64: 4, 1>}, {pipeline_mode = #tpu.pipeline_mode<synchronous>, transform_indices = @transform_3, window_bounds = array<i64: 4, 1>}]} {
    %c0_i32 = arith.constant 0 : i32
    %0 = arith.cmpi eq, %arg0, %c0_i32 : i32
    %1 = arith.extui %0 : i1 to i32
    %c0_i32_0 = arith.constant 0 : i32
    %2 = arith.cmpi ne, %1, %c0_i32_0 : i32
    scf.if %2 {
      %cst_15 = arith.constant 0.000000e+00 : f32
      %19 = vector.broadcast %cst_15 : f32 to vector<4x1xf32>
      %c0_16 = arith.constant 0 : index
      %c0_17 = arith.constant 0 : index
      %20 = vector.load %arg3[%c0_16, %c0_17] : memref<4x1xf32, #tpu.memory_space<vmem>>, vector<4x1xf32>
      tpu.vector_store %arg3[%c0_16, %c0_17], %19 {strides = array<i32>} : memref<4x1xf32, #tpu.memory_space<vmem>>, vector<4x1xf32>,
      %cst_18 = arith.constant 0.000000e+00 : f32
      %21 = vector.broadcast %cst_18 : f32 to vector<4x1xf32>
      %c0_19 = arith.constant 0 : index
      %c0_20 = arith.constant 0 : index
      %22 = vector.load %arg4[%c0_19, %c0_20] : memref<4x1xf32, #tpu.memory_space<vmem>>, vector<4x1xf32>
      tpu.vector_store %arg4[%c0_19, %c0_20], %21 {strides = array<i32>} : memref<4x1xf32, #tpu.memory_space<vmem>>, vector<4x1xf32>,
    } else {
    }
    %c0 = arith.constant 0 : index
    %c0_1 = arith.constant 0 : index
    %3 = vector.load %arg1[%c0, %c0_1] : memref<4x128xf32, #tpu.memory_space<vmem>>, vector<4x128xf32>
    %cst = arith.constant 0.000000e+00 : f32
    %4 = vector.broadcast %cst : f32 to vector<4x128xf32>
    %5 = arith.maximumf %3, %4 : vector<4x128xf32>
    %c0_2 = arith.constant 0 : index
    %c0_3 = arith.constant 0 : index
    %6 = vector.load %arg2[%c0_2, %c0_3] : memref<4x4xf32, #tpu.memory_space<vmem>>, vector<4x4xf32>
    %cst_4 = arith.constant dense<0.000000e+00> : vector<4x128xf32>
    %7 = tpu.matmul %6, %5, %cst_4 {dimension_numbers = #tpu.dot_dimension_numbers<[1], [0], [0], [1], [0, 0, 1, 1], [], []>} : vector<4x4xf32>, vector<4x128xf32>, vector<4x128xf32> -> vector<4x128xf32>
    %c0_5 = arith.constant 0 : index
    %c0_6 = arith.constant 0 : index
    %8 = vector.load %arg3[%c0_5, %c0_6] : memref<4x1xf32, #tpu.memory_space<vmem>>, vector<4x1xf32>
    %cst_7 = arith.constant dense<0.000000e+00> : vector<4xf32>
    %9 = vector.multi_reduction <add>, %7, %cst_7 [1] : vector<4x128xf32> to vector<4xf32>
    %10 = vector.shape_cast %9 : vector<4xf32> to vector<4x1xf32>
    %11 = arith.addf %8, %10 : vector<4x1xf32>
    %c0_8 = arith.constant 0 : index
    %c0_9 = arith.constant 0 : index
    %12 = vector.load %arg3[%c0_8, %c0_9] : memref<4x1xf32, #tpu.memory_space<vmem>>, vector<4x1xf32>
    tpu.vector_store %arg3[%c0_8, %c0_9], %11 {strides = array<i32>} : memref<4x1xf32, #tpu.memory_space<vmem>>, vector<4x1xf32>,
    %c0_10 = arith.constant 0 : index
    %c0_11 = arith.constant 0 : index
    %13 = vector.load %arg4[%c0_10, %c0_11] : memref<4x1xf32, #tpu.memory_space<vmem>>, vector<4x1xf32>
    %14 = arith.mulf %7, %7 : vector<4x128xf32>
    %cst_12 = arith.constant dense<0.000000e+00> : vector<4xf32>
    %15 = vector.multi_reduction <add>, %14, %cst_12 [1] : vector<4x128xf32> to vector<4xf32>
    %16 = vector.shape_cast %15 : vector<4xf32> to vector<4x1xf32>
    %17 = arith.addf %13, %16 : vector<4x1xf32>
    %c0_13 = arith.constant 0 : index
    %c0_14 = arith.constant 0 : index
    %18 = vector.load %arg4[%c0_13, %c0_14] : memref<4x1xf32, #tpu.memory_space<vmem>>, vector<4x1xf32>
    tpu.vector_store %arg4[%c0_13, %c0_14], %17 {strides = array<i32>} : memref<4x1xf32, #tpu.memory_space<vmem>>, vector<4x1xf32>,
    return
  }
  func.func @transform_0(%arg0: i32) -> (i32, i32) {
    %c0_i32 = arith.constant 0 : i32
    %c0_i32_0 = arith.constant 0 : i32
    return %c0_i32, %arg0 : i32, i32
  }
  func.func @transform_1(%arg0: i32) -> (i32, i32) {
    %c0_i32 = arith.constant 0 : i32
    %c0_i32_0 = arith.constant 0 : i32
    %c0_i32_1 = arith.constant 0 : i32
    return %c0_i32, %c0_i32_0 : i32, i32
  }
  func.func @transform_2(%arg0: i32) -> (i32, i32) {
    %c0_i32 = arith.constant 0 : i32
    %c0_i32_0 = arith.constant 0 : i32
    %c0_i32_1 = arith.constant 0 : i32
    return %c0_i32, %c0_i32_0 : i32, i32
  }
  func.func @transform_3(%arg0: i32) -> (i32, i32) {
    %c0_i32 = arith.constant 0 : i32
    %c0_i32_0 = arith.constant 0 : i32
    %c0_i32_1 = arith.constant 0 : i32
    return %c0_i32, %c0_i32_0 : i32, i32
  }
}

</mosaic_0001>

<llo_original>
// kernel: tpu_custom_call.1
$region0: #{tpu_custom_call.1}
  #allocation0 [shape = 'u32[]', space=smem, size = 0x4, offset = 0x4, fixed_abs, tag = 'smem constant byte address 0x4 - core index']
  #allocation1 [shape = 'u32[144,128]{1,0:T(1,128)}', space=vmem, size = 0x12000, scoped, tag = 'internal scratch']
  %s0 = inlined_call_operand.hbm [shape: f32[4,128], index: 0, kind: input, shape index: {}]
  %s1 = inlined_call_operand.hbm [shape: f32[4,4], index: 1, kind: input, shape index: {}]
  %s2 = inlined_call_operand.vmem [shape: f32[4,1], index: 2, kind: output, shape index: {0}]
  %s3 = inlined_call_operand.vmem [shape: f32[4,1], index: 3, kind: output, shape index: {1}]
  %4 = xla_tuple %s2, %s3
  %s5 = sld [smem:[#allocation0]]
  $region38: #{tpu_custom_call.1} parent=0
    _
  %s7 = ssub.s32 1, %s5
  %s8 = scalar_select 0, %s7, %s5
  $region1: #{tpu_custom_call.1} parent=0
    #allocation2 [shape = 'u8[2048]{0}', space=vmem, size = 0x800, scoped, tag = 'input window, operand 0, single buffered']
    #allocation3 [shape = 's32[1]{0}', space=sflag, size = 0x4, scoped, tag = 'scoped memory for tpu_custom_call.1']
    #allocation4 [shape = 'u8[2048]{0}', space=vmem, size = 0x800, scoped, tag = 'input window, operand 1, single buffered']
    #allocation5 [shape = 's32[1]{0}', space=sflag, size = 0x4, scoped, tag = 'scoped memory for tpu_custom_call.1']
    %9 = vsyncpa [#allocation3], 0
    %10 = vsyncpa [#allocation5], 0
    // Predicated region
    $region2: #{tpu_custom_call.1} parent=1 // pred_check
      _
    $region3: #{tpu_custom_call.1} parent=1 // pred_check_branch
      %12 = sbr.rel (0) target = $region5
    $region4: #{tpu_custom_call.1} parent=1 // pred_region
      %s14 = ssub.s32 64, 64
      %15 = vsyncadd [#allocation3], %s14
      %s17 = sshll.u32 [#allocation2], 4
      %s18 = int_to_ptr.vmem [resolvable:$true] %s17
      %20 = dma.hbm_to_vmem [thread:$0]  %s0, 64, %s18, [#allocation3]
    $region5: #{tpu_custom_call.1} parent=1 // pred_fallthru
      _
    // Predicated region
    $region6: #{tpu_custom_call.1} parent=1 // pred_check
      _
    $region7: #{tpu_custom_call.1} parent=1 // pred_check_branch
      %22 = sbr.rel (0) target = $region9
    $region8: #{tpu_custom_call.1} parent=1 // pred_region
      %s24 = ssub.s32 64, 64
      %25 = vsyncadd [#allocation5], %s24
      %s27 = sshll.u32 [#allocation4], 4
      %s28 = int_to_ptr.vmem [resolvable:$true] %s27
      %30 = dma.hbm_to_vmem [thread:$0]  %s1, 64, %s28, [#allocation5]
    $region9: #{tpu_custom_call.1} parent=1 // pred_fallthru
      _
    // Predicated region
    $region10: #{tpu_custom_call.1} parent=1 // pred_check
      _
    $region11: #{tpu_custom_call.1} parent=1 // pred_check_branch
      %32 = sbr.rel (0) target = $region13
    $region12: #{tpu_custom_call.1} parent=1 // pred_region
      %33 = dma.done [#allocation3], 64
    $region13: #{tpu_custom_call.1} parent=1 // pred_fallthru
      _
    // Predicated region
    $region14: #{tpu_custom_call.1} parent=1 // pred_check
      _
    $region15: #{tpu_custom_call.1} parent=1 // pred_check_branch
      %35 = sbr.rel (0) target = $region17
    $region16: #{tpu_custom_call.1} parent=1 // pred_region
      %36 = dma.done [#allocation5], 64
    $region17: #{tpu_custom_call.1} parent=1 // pred_fallthru
      _
    %p37 = scmp.eq.s32.totalorder 0, 0
    // Predicated region
    $region18: #{tpu_custom_call.1} parent=1 // pred_check
      %p38 = pneg %p37
    $region19: #{tpu_custom_call.1} parent=1 // pred_check_branch
      %40 = sbr.rel (%p38) target = $region21
    $region20: #{tpu_custom_call.1} parent=1 // pred_region
      %vm41 = vcmask 3072
      %42 = vst.msk [vmem:[%s2] sm:$0xf] %vm41, 0.0
      %43 = vst.msk [vmem:[%s3] sm:$0xf] %vm41, 0.0
    $region21: #{tpu_custom_call.1} parent=1 // pred_fallthru
      _
    %v44 = vld [vmem:[#allocation2] sm:$0xf]
    %v45 = vmax.f32 %v44, 0.0
    %v46 = vld [vmem:[#allocation4] sm:$0xf]
    %vm47 = vcmask 31744
    %v49 = vsel %vm47, %v46, 0
    %vm51 = vcmask 1043456
    %v53 = vsel %vm51, %v45, 0
    %55 = vmatprep.subr.mxu0 0.0
    %56 = vmatpush1.msra.mxu0 0.0
    %57 = vmatprep.subr.mxu0 0.0
    %58 = vmatpush1.msra.mxu0 0.0
    %59 = vmatprep.subr.mxu0 0.0
    %60 = vmatpush1.msra.mxu0 0.0
    %61 = vmatprep.subr.mxu0 0.0
    %62 = vmatpush1.msra.mxu0 0.0
    %63 = vmatprep.subr.mxu0 0.0
    %64 = vmatpush1.msra.mxu0 0.0
    %65 = vmatprep.subr.mxu0 0.0
    %66 = vmatpush1.msra.mxu0 0.0
    %67 = vmatprep.subr.mxu0 0.0
    %68 = vmatpush1.msra.mxu0 0.0
    %69 = vmatprep.subr.mxu0 0.0
    %70 = vmatpush1.msra.mxu0 0.0
    %71 = vmatprep.subr.mxu0 0.0
    %72 = vmatpush1.msra.mxu0 0.0
    %73 = vmatprep.subr.mxu0 0.0
    %74 = vmatpush1.msra.mxu0 0.0
    %75 = vmatprep.subr.mxu0 0.0
    %76 = vmatpush1.msra.mxu0 0.0
    %77 = vmatprep.subr.mxu0 0.0
    %78 = vmatpush1.msra.mxu0 0.0
    %79 = vmatprep.subr.mxu0 0.0
    %80 = vmatpush1.msra.mxu0 0.0
    %81 = vmatprep.subr.mxu0 0.0
    %82 = vmatpush1.msra.mxu0 0.0
    %83 = vmatprep.subr.mxu0 0.0
    %84 = vmatpush1.msra.mxu0 0.0
    %85 = vmatprep.subr.mxu0 0.0
    %86 = vmatpush1.msra.mxu0 %v53
    %87 = vmatprep.subr.mxu0 0.0
    %88 = vmatpush2.msra.mxu0 0.0
    %89 = vmatprep.subr.mxu0 0.0
    %90 = vmatpush2.msra.mxu0 0.0
    %91 = vmatprep.subr.mxu0 0.0
    %92 = vmatpush2.msra.mxu0 0.0
    %93 = vmatprep.subr.mxu0 0.0
    %94 = vmatpush2.msra.mxu0 0.0
    %95 = vmatprep.subr.mxu0 0.0
    %96 = vmatpush2.msra.mxu0 0.0
    %97 = vmatprep.subr.mxu0 0.0
    %98 = vmatpush2.msra.mxu0 0.0
    %99 = vmatprep.subr.mxu0 0.0
    %100 = vmatpush2.msra.mxu0 0.0
    %101 = vmatprep.subr.mxu0 0.0
    %102 = vmatpush2.msra.mxu0 0.0
    %103 = vmatprep.subr.mxu0 0.0
    %104 = vmatpush2.msra.mxu0 0.0
    %105 = vmatprep.subr.mxu0 0.0
    %106 = vmatpush2.msra.mxu0 0.0
    %107 = vmatprep.subr.mxu0 0.0
    %108 = vmatpush2.msra.mxu0 0.0
    %109 = vmatprep.subr.mxu0 0.0
    %110 = vmatpush2.msra.mxu0 0.0
    %111 = vmatprep.subr.mxu0 0.0
    %112 = vmatpush2.msra.mxu0 0.0
    %113 = vmatprep.subr.mxu0 0.0
    %114 = vmatpush2.msra.mxu0 0.0
    %115 = vmatprep.subr.mxu0 0.0
    %116 = vmatpush2.msra.mxu0 0.0
    %117 = vmatprep.subr.mxu0 0.0
    %118 = vmatpush2.msra.mxu0 0.0
    %119 = vmatprep.mubr.f32.mxu0 0.0
    %120 = vmatmul.mubr.f32.gmra.mxu0 %v49
    %v121 = vpop.f32.mrf.mxu0
    %v122 = vadd.f32 0.0, %v121
    %v123 = vpop.f32.mrf.mxu0
    %124 = vdwg.mxu0
    %v125 = vld [vmem:[%s2] sm:$0xf]
    %v126 = vsel %vm51, %v122, 0.0
    %127 = vadd.xlane.f32.xlu0 %v126
    %v128 = vpop.xlane.xlu0 %127
    %v129 = vadd.f32 %v125, %v128
    %vm130 = vcmask 3072
    %131 = vst.msk [vmem:[%s2] sm:$0xf] %vm130, %v129
    %v132 = vld [vmem:[%s3] sm:$0xf]
    %v133 = vmul.f32 %v122, %v122
    %v134 = vsel %vm51, %v133, 0.0
    %135 = vadd.xlane.f32.xlu0 %v134
    %v136 = vpop.xlane.xlu0 %135
    %v137 = vadd.f32 %v132, %v136
    %138 = vst.msk [vmem:[%s3] sm:$0xf] %vm130, %v137
    // Predicated region
    $region22: #{tpu_custom_call.1} parent=1 // pred_check
      _
    $region23: #{tpu_custom_call.1} parent=1 // pred_check_branch
      %140 = sbr.rel (0) target = $region25
    $region24: #{tpu_custom_call.1} parent=1 // pred_region
      _
    $region25: #{tpu_custom_call.1} parent=1 // pred_fallthru
      _
    // Predicated region
    $region26: #{tpu_custom_call.1} parent=1 // pred_check
      _
    $region27: #{tpu_custom_call.1} parent=1 // pred_check_branch
      %142 = sbr.rel (0) target = $region29
    $region28: #{tpu_custom_call.1} parent=1 // pred_region
      _
    $region29: #{tpu_custom_call.1} parent=1 // pred_fallthru
      _
    // Predicated region
    $region30: #{tpu_custom_call.1} parent=1 // pred_check
      _
    $region31: #{tpu_custom_call.1} parent=1 // pred_check_branch
      %144 = sbr.rel (0) target = $region33
    $region32: #{tpu_custom_call.1} parent=1 // pred_region
      _
    $region33: #{tpu_custom_call.1} parent=1 // pred_fallthru
      _
    // Predicated region
    $region34: #{tpu_custom_call.1} parent=1 // pred_check
      _
    $region35: #{tpu_custom_call.1} parent=1 // pred_check_branch
      %146 = sbr.rel (0) target = $region37
    $region36: #{tpu_custom_call.1} parent=1 // pred_region
      _
    $region37: #{tpu_custom_call.1} parent=1 // pred_fallthru
      _
    %147 = vsyncpa [#allocation3], 1
    %148 = vsyncpa [#allocation5], 1

</llo_original>
